<compile_context>
chip_gen: v7x
topology: tpu7x:2x2x1
jax: 0.10.0
libtpu: 0.0.40
codegen_flags: <defaults>
</compile_context>

<pallas_src>
import jax
import jax.numpy as jnp
from jax import lax
from jax.experimental import pallas as pl
from jax.experimental.pallas import tpu as pltpu

_LANES = 128


def _round_up(x, m):
    return ((x + m - 1) // m) * m


def _pick_caps():
    """(per-input per-buffer tile byte cap, scoped-VMEM limit) by chip class."""
    tile_cap, vmem_limit = 2 * 1024 * 1024, 32 * 1024 * 1024   # safe everywhere
    try:
        vmem = int(pltpu.get_tpu_info().vmem_capacity_bytes)
        if vmem <= 64 * 1024 * 1024:
            # v7x-class: 64 MiB VMEM, ~3.2 TB/s HBM -> bigger tiles, headroom.
            tile_cap, vmem_limit = 5 * 1024 * 1024, 48 * 1024 * 1024
        else:
            # v5e / v6e: 128 MiB VMEM.
            tile_cap, vmem_limit = 4 * 1024 * 1024, 64 * 1024 * 1024
    except Exception:
        pass
    return tile_cap, vmem_limit


def _make_kernel(bn, C, s_blk, S, N, need_s_mask, need_b_mask):
    """Kernel over blocks of shape (bn, C, s_blk, 128); emits an (8,128) partial."""

    def kernel(pred_ref, target_ref, out_ref):
        # Per-channel accumulation: live f32 temporaries stay ~one channel slice.
        g = pred_ref[:, 0].astype(jnp.float32) - target_ref[:, 0].astype(jnp.float32)
        for c in range(1, C):
            g = g + (pred_ref[:, c].astype(jnp.float32)
                     - target_ref[:, c].astype(jnp.float32))
        # g: (bn, s_blk, 128)

        # Mask grid-padding rows (OOB block contents are unspecified).
        if need_s_mask or need_b_mask:
            ok = None
            if need_s_mask:
                s_idx = (lax.broadcasted_iota(jnp.int32, g.shape, 1)
                         + pl.program_id(1) * s_blk)
                ok = s_idx < S
            if need_b_mask:
                b_idx = (lax.broadcasted_iota(jnp.int32, g.shape, 0)
                         + pl.program_id(0) * bn)
                b_ok = b_idx < N
                ok = b_ok if ok is None else (ok & b_ok)
            g = jnp.where(ok, g, 0.0)

        a = jnp.abs(g)

        if s_blk % 8 == 0:
            # Layout-preserving regroup into stacked (8,128) tiles; the
            # leading-axis sum lowers to plain VPU vreg adds (no XLU pass).
            part = jnp.sum(a.reshape(bn * s_blk // 8, 8, _LANES), axis=0)
        else:
            # Tiny-image fallback (whole image spans < 8 sublane rows).
            col = jnp.sum(a, axis=1)                        # (bn, 128)
            col = jnp.sum(col, axis=0, keepdims=True)       # (1, 128)
            row = lax.broadcasted_iota(jnp.int32, (8, _LANES), 0)
            part = jnp.where(row == 0, col, 0.0)
        out_ref[...] = part                                  # (8, 128) partial

    return kernel


def gray_l1(pred, target):
    """Pallas equivalent of gray_L1.forward: L1 loss between channel means."""
    assert pred.shape == target.shape, (pred.shape, target.shape)
    N, C, H, W = pred.shape
    HW = H * W
    esize = pred.dtype.itemsize
    sub = 8 * max(1, 4 // esize)          # packed sublane tile: 8 f32 / 16 bf16 / 32 i8

    p = pred.reshape(N, C, HW)
    t = target.reshape(N, C, HW)

    # Lane alignment only: pad (a copy) only when HW is not a multiple of 128.
    # All block-level raggedness is masked in-kernel instead of padded.
    lane_pad = (-HW) % _LANES
    if lane_pad:
        # TODO(synk): for HW % 128 != 0 this still materializes one padded copy
        # of each input (at most 127 extra elements per image row).
        padw = ((0, 0), (0, 0), (0, lane_pad))
        p = jnp.pad(p, padw)
        t = jnp.pad(t, padw)
    HWp = HW + lane_pad
    S = HWp // _LANES

    p = p.reshape(N, C, S, _LANES)
    t = t.reshape(N, C, S, _LANES)

    tile_cap, vmem_limit = _pick_caps()
    row_bytes = C * _LANES * esize                       # bytes per s-row (all channels)
    img_vmem = _round_up(S, sub) * row_bytes             # VMEM footprint of one image

    if img_vmem <= tile_cap:
        # Whole image(s) per step; pack batch items up to the cap, but keep at
        # least 2 grid steps when N >= 2 so both v7x TensorCores get work.
        s_blk = S
        bn = max(1, min(N, tile_cap // img_vmem))
        if N >= 2:
            bn = min(bn, pl.cdiv(N, 2))
        gn = pl.cdiv(N, bn)
        gs = 1
        if gn * gs == 1 and S >= 2 * sub:                # N == 1: split spatially
            s_blk = _round_up(pl.cdiv(S, 2), sub)
            gs = pl.cdiv(S, s_blk)
    else:
        # Large image: one batch item per step, cap-sized spatial tiles; no
        # divisor constraint (ragged tail masked in-kernel) -> no tiling cliff.
        bn = 1
        s_blk = max(sub, ((tile_cap // row_bytes) // sub) * sub)
        gn = N
        gs = pl.cdiv(S, s_blk)

    need_s_mask = gs * s_blk > S
    need_b_mask = gn * bn > N
    n_steps = gn * gs

    kernel = _make_kernel(bn, C, s_blk, S, N, need_s_mask, need_b_mask)

    in_spec = pl.BlockSpec((bn, C, s_blk, _LANES), lambda i, j: (i, 0, j, 0))
    out_spec = pl.BlockSpec((8, _LANES), lambda i, j: (i * gs + j, 0))

    try:
        cost = pl.CostEstimate(
            flops=2 * N * C * HW + N * HW,
            transcendentals=0,
            bytes_accessed=2 * N * C * HWp * esize + n_steps * 8 * _LANES * 4,
        )
    except Exception:
        cost = None

    partials = pl.pallas_call(
        kernel,
        out_shape=jax.ShapeDtypeStruct((n_steps * 8, _LANES), jnp.float32),
        grid_spec=pltpu.PrefetchScalarGridSpec(
            num_scalar_prefetch=0,
            grid=(gn, gs),
            in_specs=[in_spec, in_spec],
            out_specs=out_spec,
        ),
        compiler_params=pltpu.CompilerParams(
            dimension_semantics=("parallel", "parallel"),
            vmem_limit_bytes=vmem_limit,
        ),
        cost_estimate=cost,
    )(p, t)

    # |mean_c p - mean_c t| = |sum_c (p - t)| / C; L1Loss 'mean' divides by the
    # (N, 1, H, W) element count N*H*W.  Fold both into one denominator.
    return jnp.sum(partials) / jnp.float32(N * H * W * C)


if __name__ == "__main__":
    key = jax.random.PRNGKey(0)
    k1, k2 = jax.random.split(key)
    # Small NCHW inputs consistent with an image-to-image model.
    pred = jax.random.normal(k1, (2, 4, 16, 16), dtype=jnp.float32)
    target = jax.random.normal(k2, (2, 4, 16, 16), dtype=jnp.float32)

    loss = jax.block_until_ready(gray_l1(pred, target))

    # Pure-JAX reference of the exact PyTorch semantics.
    ref = jnp.mean(jnp.abs(jnp.mean(pred, axis=1, keepdims=True)
                           - jnp.mean(target, axis=1, keepdims=True)))
    assert jnp.allclose(loss, ref, rtol=1e-5, atol=1e-6), (loss, ref)

    print("KERNEL_OK")
</pallas_src>

<mosaic_0001>
module attributes {stable_mosaic.version = 11 : i64} {
  func.func @kernel(%arg0: i32, %arg1: i32, %arg2: memref<1x4x2x128xf32, #tpu.memory_space<vmem>>, %arg3: memref<1x4x2x128xf32, #tpu.memory_space<vmem>>, %arg4: memref<8x128xf32, #tpu.memory_space<vmem>>) attributes {dimension_semantics = [#tpu.dimension_semantics<parallel>, #tpu.dimension_semantics<parallel>], iteration_bounds = array<i64: 2, 1>, scalar_prefetch = 0 : i64, scratch_operands = 0 : i64, tpu.core_type = #tpu.core_type<tc>, window_params = [{transform_indices = @transform_0, window_bounds = array<i64: 1, 4, 2, 128>}, {transform_indices = @transform_1, window_bounds = array<i64: 1, 4, 2, 128>}, {transform_indices = @transform_2, window_bounds = array<i64: 8, 128>}]} {
    %c0 = arith.constant 0 : index
    %c0_0 = arith.constant 0 : index
    %c0_1 = arith.constant 0 : index
    %c0_2 = arith.constant 0 : index
    %0 = vector.load %arg2[%c0, %c0_0, %c0_1, %c0_2] : memref<1x4x2x128xf32, #tpu.memory_space<vmem>>, vector<1x1x2x128xf32>
    %1 = vector.shape_cast %0 : vector<1x1x2x128xf32> to vector<1x2x128xf32>
    %c0_3 = arith.constant 0 : index
    %c0_4 = arith.constant 0 : index
    %c0_5 = arith.constant 0 : index
    %c0_6 = arith.constant 0 : index
    %2 = vector.load %arg3[%c0_3, %c0_4, %c0_5, %c0_6] : memref<1x4x2x128xf32, #tpu.memory_space<vmem>>, vector<1x1x2x128xf32>
    %3 = vector.shape_cast %2 : vector<1x1x2x128xf32> to vector<1x2x128xf32>
    %4 = arith.subf %1, %3 : vector<1x2x128xf32>
    %c0_7 = arith.constant 0 : index
    %c1 = arith.constant 1 : index
    %c0_8 = arith.constant 0 : index
    %c0_9 = arith.constant 0 : index
    %5 = vector.load %arg2[%c0_7, %c1, %c0_8, %c0_9] : memref<1x4x2x128xf32, #tpu.memory_space<vmem>>, vector<1x1x2x128xf32>
    %6 = vector.shape_cast %5 : vector<1x1x2x128xf32> to vector<1x2x128xf32>
    %c0_10 = arith.constant 0 : index
    %c1_11 = arith.constant 1 : index
    %c0_12 = arith.constant 0 : index
    %c0_13 = arith.constant 0 : index
    %7 = vector.load %arg3[%c0_10, %c1_11, %c0_12, %c0_13] : memref<1x4x2x128xf32, #tpu.memory_space<vmem>>, vector<1x1x2x128xf32>
    %8 = vector.shape_cast %7 : vector<1x1x2x128xf32> to vector<1x2x128xf32>
    %9 = arith.subf %6, %8 : vector<1x2x128xf32>
    %10 = arith.addf %4, %9 : vector<1x2x128xf32>
    %c0_14 = arith.constant 0 : index
    %c2 = arith.constant 2 : index
    %c0_15 = arith.constant 0 : index
    %c0_16 = arith.constant 0 : index
    %11 = vector.load %arg2[%c0_14, %c2, %c0_15, %c0_16] : memref<1x4x2x128xf32, #tpu.memory_space<vmem>>, vector<1x1x2x128xf32>
    %12 = vector.shape_cast %11 : vector<1x1x2x128xf32> to vector<1x2x128xf32>
    %c0_17 = arith.constant 0 : index
    %c2_18 = arith.constant 2 : index
    %c0_19 = arith.constant 0 : index
    %c0_20 = arith.constant 0 : index
    %13 = vector.load %arg3[%c0_17, %c2_18, %c0_19, %c0_20] : memref<1x4x2x128xf32, #tpu.memory_space<vmem>>, vector<1x1x2x128xf32>
    %14 = vector.shape_cast %13 : vector<1x1x2x128xf32> to vector<1x2x128xf32>
    %15 = arith.subf %12, %14 : vector<1x2x128xf32>
    %16 = arith.addf %10, %15 : vector<1x2x128xf32>
    %c0_21 = arith.constant 0 : index
    %c3 = arith.constant 3 : index
    %c0_22 = arith.constant 0 : index
    %c0_23 = arith.constant 0 : index
    %17 = vector.load %arg2[%c0_21, %c3, %c0_22, %c0_23] : memref<1x4x2x128xf32, #tpu.memory_space<vmem>>, vector<1x1x2x128xf32>
    %18 = vector.shape_cast %17 : vector<1x1x2x128xf32> to vector<1x2x128xf32>
    %c0_24 = arith.constant 0 : index
    %c3_25 = arith.constant 3 : index
    %c0_26 = arith.constant 0 : index
    %c0_27 = arith.constant 0 : index
    %19 = vector.load %arg3[%c0_24, %c3_25, %c0_26, %c0_27] : memref<1x4x2x128xf32, #tpu.memory_space<vmem>>, vector<1x1x2x128xf32>
    %20 = vector.shape_cast %19 : vector<1x1x2x128xf32> to vector<1x2x128xf32>
    %21 = arith.subf %18, %20 : vector<1x2x128xf32>
    %22 = arith.addf %16, %21 : vector<1x2x128xf32>
    %23 = math.absf %22 : vector<1x2x128xf32>
    %cst = arith.constant dense<0.000000e+00> : vector<1x128xf32>
    %24 = vector.multi_reduction <add>, %23, %cst [1] : vector<1x2x128xf32> to vector<1x128xf32>
    %cst_28 = arith.constant dense<0.000000e+00> : vector<128xf32>
    %25 = vector.multi_reduction <add>, %24, %cst_28 [0] : vector<1x128xf32> to vector<128xf32>
    %26 = vector.shape_cast %25 : vector<128xf32> to vector<1x128xf32>
    %27 = tpu.iota {dimensions = array<i32: 0>} : vector<8x128xi32>
    %c0_i32 = arith.constant 0 : i32
    %28 = vector.broadcast %c0_i32 : i32 to vector<8x128xi32>
    %29 = arith.cmpi eq, %27, %28 : vector<8x128xi32>
    %cst_29 = arith.constant 0.000000e+00 : f32
    %30 = vector.shape_cast %26 : vector<1x128xf32> to vector<1x128xf32>
    %31 = vector.broadcast %30 : vector<1x128xf32> to vector<8x128xf32>
    %32 = vector.broadcast %cst_29 : f32 to vector<8x128xf32>
    %33 = arith.select %29, %31, %32 : vector<8x128xi1>, vector<8x128xf32>
    %c0_30 = arith.constant 0 : index
    %c0_31 = arith.constant 0 : index
    %34 = vector.load %arg4[%c0_30, %c0_31] : memref<8x128xf32, #tpu.memory_space<vmem>>, vector<8x128xf32>
    tpu.vector_store %arg4[%c0_30, %c0_31], %33 {strides = array<i32>} : memref<8x128xf32, #tpu.memory_space<vmem>>, vector<8x128xf32>,
    return
  }
  func.func @transform_0(%arg0: i32, %arg1: i32) -> (i32, i32, i32, i32) {
    %c0_i32 = arith.constant 0 : i32
    %c0_i32_0 = arith.constant 0 : i32
    %c0_i32_1 = arith.constant 0 : i32
    return %arg0, %c0_i32, %arg1, %c0_i32_0 : i32, i32, i32, i32
  }
  func.func @transform_1(%arg0: i32, %arg1: i32) -> (i32, i32, i32, i32) {
    %c0_i32 = arith.constant 0 : i32
    %c0_i32_0 = arith.constant 0 : i32
    %c0_i32_1 = arith.constant 0 : i32
    return %arg0, %c0_i32, %arg1, %c0_i32_0 : i32, i32, i32, i32
  }
  func.func @transform_2(%arg0: i32, %arg1: i32) -> (i32, i32) {
    %c1_i32 = arith.constant 1 : i32
    %0 = arith.muli %arg0, %c1_i32 : i32
    %1 = arith.addi %0, %arg1 : i32
    %c0_i32 = arith.constant 0 : i32
    %c0_i32_0 = arith.constant 0 : i32
    return %1, %c0_i32 : i32, i32
  }
}

</mosaic_0001>

<llo_original>
// kernel: tpu_custom_call.1
$region0: #{tpu_custom_call.1}
  #allocation0 [shape = 'u32[]', space=smem, size = 0x4, offset = 0x4, fixed_abs, tag = 'smem constant byte address 0x4 - core index']
  #allocation1 [shape = 'u32[144,128]{1,0:T(1,128)}', space=vmem, size = 0x12000, scoped, tag = 'internal scratch']
  %s0 = inlined_call_operand.hbm [shape: f32[2,4,2,128], index: 0, kind: input, shape index: {}]
  %s1 = inlined_call_operand.hbm [shape: f32[2,4,2,128], index: 1, kind: input, shape index: {}]
  %s2 = inlined_call_operand.hbm [shape: f32[16,128], index: 2, kind: output, shape index: {}]
  %s3 = sld [smem:[#allocation0]]
  $region49: #{tpu_custom_call.1} parent=0
    _
  %s5 = ssub.s32 1, %s3
  %s6 = scalar_select 0, %s5, %s3
  $region1: #{tpu_custom_call.1} parent=0
    #allocation2 [shape = 'u8[8192]{0}', space=vmem, size = 0x2000, scoped, tag = 'input window, operand 0']
    #allocation3 [shape = 's32[2]{0}', space=sflag, size = 0x8, scoped, tag = 'scoped memory for tpu_custom_call.1']
    #allocation4 [shape = 's32[2]{0}', space=sflag, size = 0x8, scoped, tag = 'scoped memory for tpu_custom_call.1']
    #allocation5 [shape = 'u8[8192]{0}', space=vmem, size = 0x2000, scoped, tag = 'input window, operand 1']
    #allocation6 [shape = 's32[2]{0}', space=sflag, size = 0x8, scoped, tag = 'scoped memory for tpu_custom_call.1']
    #allocation7 [shape = 'u8[8192]{0}', space=vmem, size = 0x2000, scoped, tag = 'output window, operand 0']
    %7 = vsyncpa [#allocation3], 0
    %s8 = scalar_lea.sflag [#allocation3], 1
    %9 = vsyncpa %s8, 0
    %10 = vsyncpa [#allocation6], 0
    %s11 = scalar_lea.sflag [#allocation6], 1
    %12 = vsyncpa %s11, 0
    %13 = vsyncpa [#allocation4], 0
    %s14 = scalar_lea.sflag [#allocation4], 1
    %15 = vsyncpa %s14, 0
    loop: start=0, step=1, limit=4
    $region2: #{tpu_custom_call.1} parent=1 // loop_pre_header
      _
    $region3: #{tpu_custom_call.1} parent=1 // loop_header
      %s17 = sphi 0, %s21
      %p18 = scmp.ge.s32.totalorder %s17, 4
      %s24 = sphi 0, %s36
      %s25 = sphi 0, %s32
      %s26 = sphi 0, %s24
      %s27 = sphi 0, %s25
      %s28 = sphi 0, %s26
      %s29 = sphi 0, %s27
      %s41 = sphi 0, %s43
      %s44 = sphi 0, %s41
      %s45 = sphi 0, %s44
      %s61 = sphi 0, %s45
      %s69 = sphi 0, %s71
      %s72 = sphi 0, %s69
      %s73 = sphi 0, %s72
      %s89 = sphi 0, %s73
      %s97 = sphi 0, %s99
      %s100 = sphi 0, %s97
      %s101 = sphi 0, %s100
      %s117 = sphi 0, %s101
    $region4: #{tpu_custom_call.1} parent=1 // loop_header_branch
      %20 = sbr.rel (%p18) target = $region8
    $region5: #{tpu_custom_call.1} parent=1 // loop_body
      %s22 = ssub.s32 %s17, 1
      %s23 = ssub.s32 %s17, 2
      %s30 = sadd.s32 1, %s25
      %p31 = scmp.ge.s32.totalorder %s30, 1
      %s32 = scalar_select %p31, 0, %s30
      %s33 = sadd.s32 1, %s24
      %s34 = scalar_select %p31, %s33, %s24
      %p35 = scmp.ge.s32.totalorder %s34, 2
      %s36 = scalar_select %p35, 0, %s34
      %s37 = ssub.s32 %s24, %s36
      %s38 = ssub.s32 %s25, %s32
      %s39 = sor.u32 %s37, %s38
      %p40 = scmp.eq.s32.totalorder %s39, 0
      %s42 = sadd.s32 %s41, 1
      %s43 = scalar_select %p40, %s41, %s42
      %p46 = pneg %p40
      %p47 = scmp.eq.s32.totalorder %s17, 1
      %p48 = por %p46, %p47
      %p49 = scmp.ne.s32.totalorder %s41, %s44
      %p50 = scmp.eq.s32.totalorder %s17, 0
      %p51 = por %p49, %p50
      %p52 = scmp.ne.s32.totalorder %s41, %s44
      %p53 = scmp.eq.s32.totalorder %s22, 1
      %p54 = por %p52, %p53
      %p55 = scmp.ne.s32.totalorder %s44, %s45
      %p56 = scmp.eq.s32.totalorder %s22, 0
      %p57 = por %p55, %p56
      %p58 = scmp.ne.s32.totalorder %s44, %s45
      %p59 = scmp.eq.s32.totalorder %s23, 1
      %p60 = por %p58, %p59
      %p62 = scmp.ne.s32.totalorder %s45, %s61
      %p63 = scmp.eq.s32.totalorder %s23, 0
      %p64 = por %p62, %p63
      %s65 = ssub.s32 %s24, %s36
      %s66 = ssub.s32 %s25, %s32
      %s67 = sor.u32 %s65, %s66
      %p68 = scmp.eq.s32.totalorder %s67, 0
      %s70 = sadd.s32 %s69, 1
      %s71 = scalar_select %p68, %s69, %s70
      %p74 = pneg %p68
      %p75 = scmp.eq.s32.totalorder %s17, 1
      %p76 = por %p74, %p75
      %p77 = scmp.ne.s32.totalorder %s69, %s72
      %p78 = scmp.eq.s32.totalorder %s17, 0
      %p79 = por %p77, %p78
      %p80 = scmp.ne.s32.totalorder %s69, %s72
      %p81 = scmp.eq.s32.totalorder %s22, 1
      %p82 = por %p80, %p81
      %p83 = scmp.ne.s32.totalorder %s72, %s73
      %p84 = scmp.eq.s32.totalorder %s22, 0
      %p85 = por %p83, %p84
      %p86 = scmp.ne.s32.totalorder %s72, %s73
      %p87 = scmp.eq.s32.totalorder %s23, 1
      %p88 = por %p86, %p87
      %p90 = scmp.ne.s32.totalorder %s73, %s89
      %p91 = scmp.eq.s32.totalorder %s23, 0
      %p92 = por %p90, %p91
      %s93 = sadd.s32 %s24, %s25
      %s94 = sadd.s32 %s36, %s32
      %s95 = ssub.s32 %s93, %s94
      %p96 = scmp.eq.s32.totalorder %s95, 0
      %s98 = sadd.s32 %s97, 1
      %s99 = scalar_select %p96, %s97, %s98
      %p102 = pneg %p96
      %p103 = scmp.eq.s32.totalorder %s17, 1
      %p104 = por %p102, %p103
      %p105 = scmp.ne.s32.totalorder %s97, %s100
      %p106 = scmp.eq.s32.totalorder %s17, 0
      %p107 = por %p105, %p106
      %p108 = scmp.ne.s32.totalorder %s97, %s100
      %p109 = scmp.eq.s32.totalorder %s22, 1
      %p110 = por %p108, %p109
      %p111 = scmp.ne.s32.totalorder %s100, %s101
      %p112 = scmp.eq.s32.totalorder %s22, 0
      %p113 = por %p111, %p112
      %p114 = scmp.ne.s32.totalorder %s100, %s101
      %p115 = scmp.eq.s32.totalorder %s23, 1
      %p116 = por %p114, %p115
      %p118 = scmp.ne.s32.totalorder %s101, %s117
      %p119 = scmp.eq.s32.totalorder %s23, 0
      %p120 = por %p118, %p119
      %p121 = scmp.le.s32.totalorder 1, %s17
      %p122 = scmp.lt.s32.totalorder %s17, 3
      %p123 = pnand %p121, %p122
      %p124 = pneg %p123
      // Predicated region
      $region9: #{tpu_custom_call.1} parent=5 // pred_check
        _
      $region10: #{tpu_custom_call.1} parent=5 // pred_check_branch
        %126 = sbr.rel (%p123) target = $region12
      $region11: #{tpu_custom_call.1} parent=5 // pred_region
        %s127 = ssub.s32 %s17, 1
      $region12: #{tpu_custom_call.1} parent=5 // pred_fallthru
        _
      %p128 = scmp.lt.s32.totalorder %s17, 2
      // Predicated region
      $region13: #{tpu_custom_call.1} parent=5 // pred_check
        %p129 = pneg %p128
      $region14: #{tpu_custom_call.1} parent=5 // pred_check_branch
        %131 = sbr.rel (%p129) target = $region16
      $region15: #{tpu_custom_call.1} parent=5 // pred_region
        // Predicated region
        $region17: #{tpu_custom_call.1} parent=15 // pred_check
          %p132 = pneg %p51
        $region18: #{tpu_custom_call.1} parent=15 // pred_check_branch
          %134 = sbr.rel (%p132) target = $region20
        $region19: #{tpu_custom_call.1} parent=15 // pred_region
          %s135 = sand.u32 %s41, 1
          %s136 = scalar_lea.sflag [#allocation3], %s135
          %s137 = sand.u32 %s41, 1
          %s138 = smul.addr %s137, 8
          %s139 = scalar_lea.vmem [#allocation2], %s138
          %s141 = ssub.s32 128, 128
          %142 = vsyncadd %s136, %s141
          %s143 = smul.addr %s24, 4
          %s144 = sadd.s32 %s25, %s143
          %s145 = smul.addr %s144, 32
          %s146 = scalar_lea.hbm %s0, %s145
          %s147 = sshll.u32 %s139, 4
          %s148 = int_to_ptr.vmem [resolvable:$true] %s147
          %153 = dma.hbm_to_vmem [thread:$0]  %s146, 128, %s148, %s136, 32, 32, 2
        $region20: #{tpu_custom_call.1} parent=15 // pred_fallthru
          _
        // Predicated region
        $region21: #{tpu_custom_call.1} parent=15 // pred_check
          %p154 = pneg %p79
        $region22: #{tpu_custom_call.1} parent=15 // pred_check_branch
          %156 = sbr.rel (%p154) target = $region24
        $region23: #{tpu_custom_call.1} parent=15 // pred_region
          %s157 = sand.u32 %s69, 1
          %s158 = scalar_lea.sflag [#allocation6], %s157
          %s159 = sand.u32 %s69, 1
          %s160 = smul.addr %s159, 8
          %s161 = scalar_lea.vmem [#allocation5], %s160
          %s163 = ssub.s32 128, 128
          %164 = vsyncadd %s158, %s163
          %s165 = smul.addr %s24, 4
          %s166 = sadd.s32 %s25, %s165
          %s167 = smul.addr %s166, 32
          %s168 = scalar_lea.hbm %s1, %s167
          %s169 = sshll.u32 %s161, 4
          %s170 = int_to_ptr.vmem [resolvable:$true] %s169
          %175 = dma.hbm_to_vmem [thread:$0]  %s168, 128, %s170, %s158, 32, 32, 2
        $region24: #{tpu_custom_call.1} parent=15 // pred_fallthru
          _
      $region16: #{tpu_custom_call.1} parent=5 // pred_fallthru
        _
      %p176 = scmp.le.s32.totalorder 1, %s17
      %p177 = scmp.lt.s32.totalorder %s17, 3
      %p178 = pnand %p176, %p177
      %p179 = pneg %p178
      // Predicated region
      $region25: #{tpu_custom_call.1} parent=5 // pred_check
        _
      $region26: #{tpu_custom_call.1} parent=5 // pred_check_branch
        %181 = sbr.rel (%p178) target = $region28
      $region27: #{tpu_custom_call.1} parent=5 // pred_region
        %s182 = ssub.s32 %s17, 1
        %s183 = sand.u32 %s44, 1
        %s184 = scalar_lea.sflag [#allocation3], %s183
        %s185 = sand.u32 %s44, 1
        %s186 = smul.addr %s185, 8
        %s187 = scalar_lea.vmem [#allocation2], %s186
        // Predicated region
        $region29: #{tpu_custom_call.1} parent=27 // pred_check
          %p188 = pneg %p57
        $region30: #{tpu_custom_call.1} parent=27 // pred_check_branch
          %190 = sbr.rel (%p188) target = $region32
        $region31: #{tpu_custom_call.1} parent=27 // pred_region
          %191 = dma.done %s184, 128
        $region32: #{tpu_custom_call.1} parent=27 // pred_fallthru
          _
        %s192 = sand.u32 %s72, 1
        %s193 = scalar_lea.sflag [#allocation6], %s192
        %s194 = sand.u32 %s72, 1
        %s195 = smul.addr %s194, 8
        %s196 = scalar_lea.vmem [#allocation5], %s195
        // Predicated region
        $region33: #{tpu_custom_call.1} parent=27 // pred_check
          %p197 = pneg %p85
        $region34: #{tpu_custom_call.1} parent=27 // pred_check_branch
          %199 = sbr.rel (%p197) target = $region36
        $region35: #{tpu_custom_call.1} parent=27 // pred_region
          %200 = dma.done %s193, 128
        $region36: #{tpu_custom_call.1} parent=27 // pred_fallthru
          _
        %s201 = sand.u32 %s44, 1
        %s202 = scalar_lea.sflag [#allocation3], %s201
        %s203 = sand.u32 %s44, 1
        %s204 = smul.addr %s203, 8
        %s205 = scalar_lea.vmem [#allocation2], %s204
        %p206 = pneg %p57
        %p207 = pneg %p54
        %s208 = sand.u32 %s72, 1
        %s209 = scalar_lea.sflag [#allocation6], %s208
        %s210 = sand.u32 %s72, 1
        %s211 = smul.addr %s210, 8
        %s212 = scalar_lea.vmem [#allocation5], %s211
        %p213 = pneg %p85
        %p214 = pneg %p82
        %p215 = pneg %p113
        %p216 = pneg %p110
        %s217 = sand.u32 %s100, 1
        %s218 = scalar_lea.sflag [#allocation4], %s217
        %s219 = sand.u32 %s100, 1
        %s220 = smul.addr %s219, 8
        %s221 = scalar_lea.vmem [#allocation7], %s220
        %s222 = sadd.s32 %s26, %s27
        %v223 = vld [vmem:[%s187] sm:$0x3]
        %v224 = vld [vmem:[%s196] sm:$0x3]
        %v225 = vsub.f32 %v223, %v224
        %s226 = scalar_lea.vmem %s187, 2 [#allocation2]
        %v227 = vld [vmem:[%s226] sm:$0x3]
        %s228 = scalar_lea.vmem %s196, 2 [#allocation5]
        %v229 = vld [vmem:[%s228] sm:$0x3]
        %v230 = vsub.f32 %v227, %v229
        %v231 = vadd.f32 %v225, %v230
        %s232 = scalar_lea.vmem %s187, 4 [#allocation2]
        %v233 = vld [vmem:[%s232] sm:$0x3]
        %s234 = scalar_lea.vmem %s196, 4 [#allocation5]
        %v235 = vld [vmem:[%s234] sm:$0x3]
        %v236 = vsub.f32 %v233, %v235
        %v237 = vadd.f32 %v231, %v236
        %s238 = scalar_lea.vmem %s187, 6 [#allocation2]
        %v239 = vld [vmem:[%s238] sm:$0x3]
        %s240 = scalar_lea.vmem %s196, 6 [#allocation5]
        %v241 = vld [vmem:[%s240] sm:$0x3]
        %v242 = vsub.f32 %v239, %v241
        %v243 = vadd.f32 %v237, %v242
        %v244 = vand.u32 2147483647, %v243
        %vm245 = vcmask 1041408
        %v246 = vsel %vm245, %v244, 0.0
        %v247 = vrot.slane %v246, 4
        %v248 = vadd.f32 %v246, %v247
        %v249 = vrot.slane %v248, 2
        %v250 = vadd.f32 %v248, %v249
        %v251 = vrot.slane %v250, 1
        %v252 = vadd.f32 %v250, %v251
        %v253 = vadd.f32 %v252, 0.0
        %v254 = vlaneseq
        %v255 = vshrl.u32 %v254, 7
        %vm256 = vcmp.eq.s32.totalorder %v255, 0
        %v257 = vsel %vm256, %v253, 0.0
        %258 = vst [vmem:[%s221] sm:$0xff] %v257
        %s259 = sand.u32 %s100, 1
        %s260 = scalar_lea.sflag [#allocation4], %s259
        %s261 = sand.u32 %s100, 1
        %s262 = smul.addr %s261, 8
        %s263 = scalar_lea.vmem [#allocation7], %s262
        // Predicated region
        $region37: #{tpu_custom_call.1} parent=27 // pred_check
          %p264 = pneg %p110
        $region38: #{tpu_custom_call.1} parent=27 // pred_check_branch
          %266 = sbr.rel (%p264) target = $region40
        $region39: #{tpu_custom_call.1} parent=27 // pred_region
          %s267 = sadd.s32 %s26, %s27
          %s269 = ssub.s32 128, 128
          %270 = vsyncadd %s260, %s269
          %s271 = smul.addr %s267, 128
          %s272 = scalar_lea.hbm %s2, %s271
          %s274 = sshll.u32 %s263, 4
          %s275 = int_to_ptr.vmem [resolvable:$true] %s274
          %277 = dma.vmem_to_hbm [thread:$0]  %s275, 128, %s272, %s260
        $region40: #{tpu_custom_call.1} parent=27 // pred_fallthru
          _
      $region28: #{tpu_custom_call.1} parent=5 // pred_fallthru
        _
      %p278 = scmp.le.s32.totalorder 2, %s17
      // Predicated region
      $region41: #{tpu_custom_call.1} parent=5 // pred_check
        %p279 = pneg %p278
      $region42: #{tpu_custom_call.1} parent=5 // pred_check_branch
        %281 = sbr.rel (%p279) target = $region44
      $region43: #{tpu_custom_call.1} parent=5 // pred_region
        %s282 = ssub.s32 %s17, 2
        // Predicated region
        $region45: #{tpu_custom_call.1} parent=43 // pred_check
          %p283 = pneg %p116
        $region46: #{tpu_custom_call.1} parent=43 // pred_check_branch
          %285 = sbr.rel (%p283) target = $region48
        $region47: #{tpu_custom_call.1} parent=43 // pred_region
          %s286 = sand.u32 %s101, 1
          %s287 = scalar_lea.sflag [#allocation4], %s286
          %s288 = sand.u32 %s101, 1
          %s289 = smul.addr %s288, 8
          %s290 = scalar_lea.vmem [#allocation7], %s289
          %291 = dma.done %s287, 128
        $region48: #{tpu_custom_call.1} parent=43 // pred_fallthru
          _
      $region44: #{tpu_custom_call.1} parent=5 // pred_fallthru
        _
    $region6: #{tpu_custom_call.1} parent=1 // loop_footer
      %s21 = sadd.s32 1, %s17
    $region7: #{tpu_custom_call.1} parent=1 // loop_footer_branch
      %16 = sbr.rel target = $region3
    $region8: #{tpu_custom_call.1} parent=1 // loop_exit
      _
    %292 = vsyncpa [#allocation3], 1
    %s293 = scalar_lea.sflag [#allocation3], 1
    %294 = vsyncpa %s293, 1
    %295 = vsyncpa [#allocation6], 1
    %s296 = scalar_lea.sflag [#allocation6], 1
    %297 = vsyncpa %s296, 1
    %298 = vsyncpa [#allocation4], 1
    %s299 = scalar_lea.sflag [#allocation4], 1
    %300 = vsyncpa %s299, 1

</llo_original>
